<compile_context>
chip_gen: v5e
topology: v5e:2x2
jax: 0.10.0
libtpu: 0.0.40
codegen_flags: <defaults>
</compile_context>

<pallas_src>
import jax
import jax.numpy as jnp
from jax.experimental import pallas as pl
from jax.experimental.pallas import tpu as pltpu

ALPHA = 0.1          # environment.alpha (deterministic constant)
EPS = 1e-6           # softening for the star force


def star_dynamics_kernel(c_ref, z_ref, o_ref):
    """Channel-major hot path: friction + star force + control -> x_dot.

    c_ref : SMEM (2,)         learnable star parameters (cx, cy)
    z_ref : VMEM (6, R, 128)  state tile, channel-major, dense (R,128) slabs
    o_ref : VMEM (4, R, 128)  x_dot tile, channel-major, dense (R,128) slabs
    """
    # Scalars: read once per grid step (single broadcast each).
    cx = c_ref[0]
    cy = c_ref[1]

    # Dense (R, 128) channel slabs read directly from the ref.
    qx = z_ref[0]
    vx = z_ref[1]
    qy = z_ref[2]
    vy = z_ref[3]
    ux = z_ref[4]
    uy = z_ref[5]

    # force = force_model(qx, qy, cx, cy): attraction toward the star at (cx, cy)
    dx = qx - cx
    dy = qy - cy
    r2 = dx * dx + dy * dy + EPS
    rs = jax.lax.rsqrt(r2)         # single EUP op
    inv_r3 = rs * rs * rs          # r^-3 via two VPU muls

    # acceleration = force + friction + u
    ax = -dx * inv_r3 - ALPHA * vx + ux
    ay = -dy * inv_r3 - ALPHA * vy + uy

    # x_dot channels = (vx, ax, vy, ay); full-vreg unmasked stores.
    o_ref[0] = vx
    o_ref[1] = ax
    o_ref[2] = vy
    o_ref[3] = ay


def neural_model_forward(z, c, *, max_rows_per_step=2048):
    """z: (N, 6) f32, c: (2,) f32 -> x_dot: (N, 4) f32.

    max_rows_per_step: rows of 128 lanes per grid step (multiple of 8).
    2048 rows = 256K elements per step, ~21 MB of double-buffered VMEM —
    safe on v7x (64 MiB) and comfortably amortizes grid-step overhead on
    v5e/v6e/v7x.
    """
    N, six = z.shape
    assert six == 6

    # Pad the batch only to a multiple of 128 lanes; if the input spans more
    # than one max tile, pad further to a multiple of the tile so blocks
    # divide evenly (waste fraction <= R/rows, small for large N).
    rows = pl.cdiv(N, 128)
    if rows <= max_rows_per_step:
        tile_rows = rows                        # single full-extent block
        rows_pad = rows
    else:
        tile_rows = max_rows_per_step           # multiple of 8
        rows_pad = pl.cdiv(rows, tile_rows) * tile_rows
    n_pad = rows_pad * 128

    # Channel-major, lane-dense layout: (6, rows_pad, 128).  Under jit the
    # transpose + pad + reshape fuse into a single relayout copy.
    zt = z.T                                    # (6, N)
    if n_pad != N:
        # Padded lanes produce finite garbage (r2 >= EPS) and are sliced off.
        zt = jnp.pad(zt, ((0, 0), (0, n_pad - N)))
    z3 = zt.reshape(6, rows_pad, 128)

    out3 = pl.pallas_call(
        star_dynamics_kernel,
        out_shape=jax.ShapeDtypeStruct((4, rows_pad, 128), z.dtype),
        grid=(rows_pad // tile_rows,),
        in_specs=[
            pl.BlockSpec(memory_space=pltpu.SMEM),               # c: (2,) in SMEM
            pl.BlockSpec((6, tile_rows, 128), lambda i: (0, i, 0)),
        ],
        out_specs=pl.BlockSpec((4, tile_rows, 128), lambda i: (0, i, 0)),
        compiler_params=pltpu.CompilerParams(
            dimension_semantics=("parallel",)),
    )(c, z3)

    return out3.reshape(4, n_pad)[:, :N].T      # back to (N, 4)


def _reference_forward(z, c):
    """Pure-JAX reference mirroring the torch forward (for correctness check)."""
    qx, vx, qy, vy, ux, uy = [z[:, i] for i in range(6)]
    dx, dy = qx - c[0], qy - c[1]
    r2 = dx * dx + dy * dy + EPS
    inv_r3 = r2 ** (-1.5)
    fx, fy = -dx * inv_r3, -dy * inv_r3
    ax = fx - ALPHA * vx + ux
    ay = fy - ALPHA * vy + uy
    return jnp.stack([vx, ax, vy, ay], axis=1)


if __name__ == "__main__":
    key = jax.random.PRNGKey(0)
    N = 200                                  # deliberately not a multiple of 128
    z = jax.random.normal(key, (N, 6), dtype=jnp.float32)
    # nn.Parameter(torch.tensor([0.1, 0.1])) — deterministic init
    c = jnp.array([0.1, 0.1], dtype=jnp.float32)

    fwd = jax.jit(neural_model_forward)      # fuse transpose/pad/reshape around the kernel
    out = fwd(z, c)
    jax.block_until_ready(out)

    assert out.shape == (N, 4) and out.dtype == jnp.float32
    ref = _reference_forward(z, c)
    assert jnp.allclose(out, ref, rtol=1e-5, atol=1e-5)

    print("KERNEL_OK")
</pallas_src>

<mosaic_0001>
module attributes {stable_mosaic.version = 11 : i64} {
  func.func @star_dynamics_kernel(%arg0: i32, %arg1: memref<2xf32, #tpu.memory_space<smem>>, %arg2: memref<6x2x128xf32, #tpu.memory_space<vmem>>, %arg3: memref<4x2x128xf32, #tpu.memory_space<vmem>>) attributes {dimension_semantics = [#tpu.dimension_semantics<parallel>], iteration_bounds = array<i64: 1>, scalar_prefetch = 0 : i64, scratch_operands = 0 : i64, tpu.core_type = #tpu.core_type<tc>, window_params = [{transform_indices = @transform_0, window_bounds = array<i64: 2>}, {transform_indices = @transform_1, window_bounds = array<i64: 6, 2, 128>}, {transform_indices = @transform_2, window_bounds = array<i64: 4, 2, 128>}]} {
    %c0 = arith.constant 0 : index
    %0 = memref.load %arg1[%c0] : memref<2xf32, #tpu.memory_space<smem>>
    %c1 = arith.constant 1 : index
    %1 = memref.load %arg1[%c1] : memref<2xf32, #tpu.memory_space<smem>>
    %c0_0 = arith.constant 0 : index
    %c0_1 = arith.constant 0 : index
    %c0_2 = arith.constant 0 : index
    %2 = vector.load %arg2[%c0_0, %c0_1, %c0_2] : memref<6x2x128xf32, #tpu.memory_space<vmem>>, vector<1x2x128xf32>
    %3 = vector.shape_cast %2 : vector<1x2x128xf32> to vector<2x128xf32>
    %c1_3 = arith.constant 1 : index
    %c0_4 = arith.constant 0 : index
    %c0_5 = arith.constant 0 : index
    %4 = vector.load %arg2[%c1_3, %c0_4, %c0_5] : memref<6x2x128xf32, #tpu.memory_space<vmem>>, vector<1x2x128xf32>
    %5 = vector.shape_cast %4 : vector<1x2x128xf32> to vector<2x128xf32>
    %c2 = arith.constant 2 : index
    %c0_6 = arith.constant 0 : index
    %c0_7 = arith.constant 0 : index
    %6 = vector.load %arg2[%c2, %c0_6, %c0_7] : memref<6x2x128xf32, #tpu.memory_space<vmem>>, vector<1x2x128xf32>
    %7 = vector.shape_cast %6 : vector<1x2x128xf32> to vector<2x128xf32>
    %c3 = arith.constant 3 : index
    %c0_8 = arith.constant 0 : index
    %c0_9 = arith.constant 0 : index
    %8 = vector.load %arg2[%c3, %c0_8, %c0_9] : memref<6x2x128xf32, #tpu.memory_space<vmem>>, vector<1x2x128xf32>
    %9 = vector.shape_cast %8 : vector<1x2x128xf32> to vector<2x128xf32>
    %c4 = arith.constant 4 : index
    %c0_10 = arith.constant 0 : index
    %c0_11 = arith.constant 0 : index
    %10 = vector.load %arg2[%c4, %c0_10, %c0_11] : memref<6x2x128xf32, #tpu.memory_space<vmem>>, vector<1x2x128xf32>
    %11 = vector.shape_cast %10 : vector<1x2x128xf32> to vector<2x128xf32>
    %c5 = arith.constant 5 : index
    %c0_12 = arith.constant 0 : index
    %c0_13 = arith.constant 0 : index
    %12 = vector.load %arg2[%c5, %c0_12, %c0_13] : memref<6x2x128xf32, #tpu.memory_space<vmem>>, vector<1x2x128xf32>
    %13 = vector.shape_cast %12 : vector<1x2x128xf32> to vector<2x128xf32>
    %14 = vector.broadcast %0 : f32 to vector<2x128xf32>
    %15 = arith.subf %3, %14 : vector<2x128xf32>
    %16 = vector.broadcast %1 : f32 to vector<2x128xf32>
    %17 = arith.subf %7, %16 : vector<2x128xf32>
    %18 = arith.mulf %15, %15 : vector<2x128xf32>
    %19 = arith.mulf %17, %17 : vector<2x128xf32>
    %20 = arith.addf %18, %19 : vector<2x128xf32>
    %cst = arith.constant 9.99999997E-7 : f32
    %21 = vector.broadcast %cst : f32 to vector<2x128xf32>
    %22 = arith.addf %20, %21 : vector<2x128xf32>
    %23 = math.rsqrt %22 : vector<2x128xf32>
    %24 = arith.mulf %23, %23 : vector<2x128xf32>
    %25 = arith.mulf %24, %23 : vector<2x128xf32>
    %cst_14 = arith.constant 0.000000e+00 : f32
    %26 = vector.broadcast %cst_14 : f32 to vector<2x128xf32>
    %27 = arith.subf %26, %15 : vector<2x128xf32>
    %28 = arith.mulf %27, %25 : vector<2x128xf32>
    %cst_15 = arith.constant 1.000000e-01 : f32
    %29 = vector.broadcast %cst_15 : f32 to vector<2x128xf32>
    %30 = arith.mulf %29, %5 : vector<2x128xf32>
    %31 = arith.subf %28, %30 : vector<2x128xf32>
    %32 = arith.addf %31, %11 : vector<2x128xf32>
    %cst_16 = arith.constant 0.000000e+00 : f32
    %33 = vector.broadcast %cst_16 : f32 to vector<2x128xf32>
    %34 = arith.subf %33, %17 : vector<2x128xf32>
    %35 = arith.mulf %34, %25 : vector<2x128xf32>
    %cst_17 = arith.constant 1.000000e-01 : f32
    %36 = vector.broadcast %cst_17 : f32 to vector<2x128xf32>
    %37 = arith.mulf %36, %9 : vector<2x128xf32>
    %38 = arith.subf %35, %37 : vector<2x128xf32>
    %39 = arith.addf %38, %13 : vector<2x128xf32>
    %c0_18 = arith.constant 0 : index
    %c0_19 = arith.constant 0 : index
    %c0_20 = arith.constant 0 : index
    %40 = vector.load %arg3[%c0_18, %c0_19, %c0_20] : memref<4x2x128xf32, #tpu.memory_space<vmem>>, vector<1x2x128xf32>
    %41 = vector.shape_cast %40 : vector<1x2x128xf32> to vector<2x128xf32>
    %42 = vector.shape_cast %5 : vector<2x128xf32> to vector<1x2x128xf32>
    tpu.vector_store %arg3[%c0_18, %c0_19, %c0_20], %42 {strides = array<i32>} : memref<4x2x128xf32, #tpu.memory_space<vmem>>, vector<1x2x128xf32>,
    %c1_21 = arith.constant 1 : index
    %c0_22 = arith.constant 0 : index
    %c0_23 = arith.constant 0 : index
    %43 = vector.load %arg3[%c1_21, %c0_22, %c0_23] : memref<4x2x128xf32, #tpu.memory_space<vmem>>, vector<1x2x128xf32>
    %44 = vector.shape_cast %43 : vector<1x2x128xf32> to vector<2x128xf32>
    %45 = vector.shape_cast %32 : vector<2x128xf32> to vector<1x2x128xf32>
    tpu.vector_store %arg3[%c1_21, %c0_22, %c0_23], %45 {strides = array<i32>} : memref<4x2x128xf32, #tpu.memory_space<vmem>>, vector<1x2x128xf32>,
    %c2_24 = arith.constant 2 : index
    %c0_25 = arith.constant 0 : index
    %c0_26 = arith.constant 0 : index
    %46 = vector.load %arg3[%c2_24, %c0_25, %c0_26] : memref<4x2x128xf32, #tpu.memory_space<vmem>>, vector<1x2x128xf32>
    %47 = vector.shape_cast %46 : vector<1x2x128xf32> to vector<2x128xf32>
    %48 = vector.shape_cast %9 : vector<2x128xf32> to vector<1x2x128xf32>
    tpu.vector_store %arg3[%c2_24, %c0_25, %c0_26], %48 {strides = array<i32>} : memref<4x2x128xf32, #tpu.memory_space<vmem>>, vector<1x2x128xf32>,
    %c3_27 = arith.constant 3 : index
    %c0_28 = arith.constant 0 : index
    %c0_29 = arith.constant 0 : index
    %49 = vector.load %arg3[%c3_27, %c0_28, %c0_29] : memref<4x2x128xf32, #tpu.memory_space<vmem>>, vector<1x2x128xf32>
    %50 = vector.shape_cast %49 : vector<1x2x128xf32> to vector<2x128xf32>
    %51 = vector.shape_cast %39 : vector<2x128xf32> to vector<1x2x128xf32>
    tpu.vector_store %arg3[%c3_27, %c0_28, %c0_29], %51 {strides = array<i32>} : memref<4x2x128xf32, #tpu.memory_space<vmem>>, vector<1x2x128xf32>,
    return
  }
  func.func @transform_0(%arg0: i32) -> i32 {
    %c0_i32 = arith.constant 0 : i32
    %c0_i32_0 = arith.constant 0 : i32
    return %c0_i32 : i32
  }
  func.func @transform_1(%arg0: i32) -> (i32, i32, i32) {
    %c0_i32 = arith.constant 0 : i32
    %c0_i32_0 = arith.constant 0 : i32
    %c0_i32_1 = arith.constant 0 : i32
    return %c0_i32, %arg0, %c0_i32_0 : i32, i32, i32
  }
  func.func @transform_2(%arg0: i32) -> (i32, i32, i32) {
    %c0_i32 = arith.constant 0 : i32
    %c0_i32_0 = arith.constant 0 : i32
    %c0_i32_1 = arith.constant 0 : i32
    return %c0_i32, %arg0, %c0_i32_0 : i32, i32, i32
  }
}

</mosaic_0001>

<llo_original>
// kernel: neural_model_forward.1
$region0: #{neural_model_forward.1}
  #allocation0 [shape = 'u32[]', space=smem, size = 0x4, offset = 0x4, fixed_abs, tag = 'smem constant byte address 0x4 - core index']
  #allocation1 [shape = 'u32[72,128]{1,0:T(1,128)}', space=vmem, size = 0x9000, scoped, tag = 'internal scratch']
  %s0 = inlined_call_operand.vmem [shape: f32[2], index: 0, kind: input, shape index: {}]
  %s1 = inlined_call_operand.vmem [shape: f32[6,2,128], index: 1, kind: input, shape index: {}]
  %s2 = inlined_call_operand.vmem [shape: f32[4,2,128], index: 2, kind: output, shape index: {}]
  %s3 = sld [smem:[#allocation0]]
  $region22: #{neural_model_forward.1} parent=0
    _
  %s5 = ssub.s32 1, %s3
  %s6 = scalar_select 0, %s5, %s3
  $region1: #{neural_model_forward.1} parent=0
    #allocation2 [shape = 'u8[512]{0}', space=smem, size = 0x200, scoped, tag = 'input window, operand 0, single buffered']
    #allocation3 [shape = 's32[1]{0}', space=sflag, size = 0x4, scoped, tag = 'scoped memory for neural_model_forward.1']
    %7 = vsyncpa [#allocation3], 0
    // Predicated region
    $region2: #{neural_model_forward.1} parent=1 // pred_check
      _
    $region3: #{neural_model_forward.1} parent=1 // pred_check_branch
      %9 = sbr.rel (0) target = $region5
    $region4: #{neural_model_forward.1} parent=1 // pred_region
      %11 = vsyncadd [#allocation3], 0
      %s13 = sshll.u32 %s0, 4
      %s14 = int_to_ptr.vmem [resolvable:$true] %s13
      %16 = dma.vmem_to_smem %s14, 16, [#allocation2], [#allocation3]
    $region5: #{neural_model_forward.1} parent=1 // pred_fallthru
      _
    // Predicated region
    $region6: #{neural_model_forward.1} parent=1 // pred_check
      _
    $region7: #{neural_model_forward.1} parent=1 // pred_check_branch
      %18 = sbr.rel (0) target = $region9
    $region8: #{neural_model_forward.1} parent=1 // pred_region
      _
    $region9: #{neural_model_forward.1} parent=1 // pred_fallthru
      _
    // Predicated region
    $region10: #{neural_model_forward.1} parent=1 // pred_check
      _
    $region11: #{neural_model_forward.1} parent=1 // pred_check_branch
      %20 = sbr.rel (0) target = $region13
    $region12: #{neural_model_forward.1} parent=1 // pred_region
      %22 = dma.done [#allocation3], 16
    $region13: #{neural_model_forward.1} parent=1 // pred_fallthru
      _
    %23 = sfence
    %s24 = sld [smem:[#allocation2]]
    %s25 = sld [smem:[#allocation2 + $0x1]]
    %v26 = vld [vmem:[%s1] sm:$0x3]
    %s27 = scalar_lea.vmem %s1, 2
    %v28 = vld [vmem:[%s27] sm:$0x3]
    %s29 = scalar_lea.vmem %s1, 4
    %v30 = vld [vmem:[%s29] sm:$0x3]
    %s31 = scalar_lea.vmem %s1, 6
    %v32 = vld [vmem:[%s31] sm:$0x3]
    %s33 = scalar_lea.vmem %s1, 8
    %v34 = vld [vmem:[%s33] sm:$0x3]
    %s35 = scalar_lea.vmem %s1, 10
    %v36 = vld [vmem:[%s35] sm:$0x3]
    %v37 = vstv %s24
    %v38 = vsub.f32 %v26, %v37
    %v39 = vstv %s25
    %v40 = vsub.f32 %v30, %v39
    %v41 = vmul.f32 %v38, %v38
    %v42 = vmul.f32 %v40, %v40
    %v43 = vadd.f32 %v41, %v42
    %v44 = vadd.f32 %v43, 1e-06
    %v45 = vrsqrt.pop %v44
    %v46 = vmul.f32 %v45, %v44
    %v47 = vmul.f32 %v46, %v45
    %v48 = vmul.f32 0.5, %v47
    %v49 = vsub.f32 1.5, %v48
    %v50 = vmul.f32 %v45, %v49
    %vm51 = vweird.f32 %v44
    %vm52 = vweird.f32 %v45
    %vm53 = vmor %vm51, %vm52
    %v54 = vsel %vm53, %v45, %v50
    %v55 = vmul.f32 %v54, %v54
    %v56 = vmul.f32 %v55, %v54
    %v57 = vsub.f32 0.0, %v38
    %v58 = vmul.f32 %v57, %v56
    %v59 = vmul.f32 %v28, 0.1
    %v60 = vsub.f32 %v58, %v59
    %v61 = vadd.f32 %v60, %v34
    %v62 = vsub.f32 0.0, %v40
    %v63 = vmul.f32 %v62, %v56
    %v64 = vmul.f32 %v32, 0.1
    %v65 = vsub.f32 %v63, %v64
    %v66 = vadd.f32 %v65, %v36
    %67 = vst [vmem:[%s2] sm:$0x3] %v28
    %s68 = scalar_lea.vmem %s2, 2
    %69 = vst [vmem:[%s68] sm:$0x3] %v61
    %s70 = scalar_lea.vmem %s2, 4
    %71 = vst [vmem:[%s70] sm:$0x3] %v32
    %s72 = scalar_lea.vmem %s2, 6
    %73 = vst [vmem:[%s72] sm:$0x3] %v66
    // Predicated region
    $region14: #{neural_model_forward.1} parent=1 // pred_check
      _
    $region15: #{neural_model_forward.1} parent=1 // pred_check_branch
      %75 = sbr.rel (0) target = $region17
    $region16: #{neural_model_forward.1} parent=1 // pred_region
      _
    $region17: #{neural_model_forward.1} parent=1 // pred_fallthru
      _
    // Predicated region
    $region18: #{neural_model_forward.1} parent=1 // pred_check
      _
    $region19: #{neural_model_forward.1} parent=1 // pred_check_branch
      %77 = sbr.rel (0) target = $region21
    $region20: #{neural_model_forward.1} parent=1 // pred_region
      _
    $region21: #{neural_model_forward.1} parent=1 // pred_fallthru
      _
    %78 = vsyncpa [#allocation3], 1

</llo_original>
